<compile_context>
chip_gen: v7x
topology: tpu7x:2x2x1
jax: 0.10.0
libtpu: 0.0.40
codegen_flags: <defaults>
</compile_context>

<pallas_src>
import jax
import jax.numpy as jnp
from jax import lax
from jax.experimental import pallas as pl
from jax.experimental.pallas import tpu as pltpu


def _attention_kernel(q_ref, k_ref, v_ref, wq_ref, bq_ref, wk_ref, bk_ref,
                      out_ref, attn_ref=None):
    Bb, Lq, D = q_ref.shape
    _, Lk, _ = k_ref.shape

    wq = wq_ref[...]          # (D, D)  bf16, pre-transposed: y = x @ wq + bq
    wk = wk_ref[...]          # (D, D)  bf16
    bq = bq_ref[...]          # (1, D)  f32
    bk = bk_ref[...]          # (1, D)  f32

    # ---- Fused projections: fold batch into the sublane dim; K and V share wk/bk, so a
    # single matmul handles both.  MXU operands are bf16, accumulation is f32.
    q2d = q_ref[...].reshape(Bb * Lq, D)                       # (Bb*Lq, D)   bf16
    kv2d = jnp.concatenate(
        [k_ref[...].reshape(Bb * Lk, D),
         v_ref[...].reshape(Bb * Lk, D)], axis=0)              # (2*Bb*Lk, D) bf16

    Q = jnp.dot(q2d, wq, preferred_element_type=jnp.float32) + bq    # (Bb*Lq, D)   f32
    KV = jnp.dot(kv2d, wk, preferred_element_type=jnp.float32) + bk  # (2*Bb*Lk, D) f32

    Q3 = Q.reshape(Bb, Lq, D)
    K3 = KV[:Bb * Lk].reshape(Bb, Lk, D)
    V3 = KV[Bb * Lk:].reshape(Bb, Lk, D)

    # ---- Scores: contract the last dim of both operands directly (no K transpose).
    S = lax.dot_general(
        Q3.astype(jnp.bfloat16), K3.astype(jnp.bfloat16),
        dimension_numbers=(((2,), (2,)), ((0,), (0,))),
        preferred_element_type=jnp.float32)                    # (Bb, Lq, Lk)  f32

    # ---- Numerically stable softmax; all elementwise math stays f32 (v5e has no bf16 VPU/EUP).
    m = jnp.max(S, axis=-1, keepdims=True)
    e = jnp.exp(S - m)
    denom = jnp.sum(e, axis=-1, keepdims=True)
    P = e * pl.reciprocal(denom, approx=True)                  # EUP recip instead of VPU divide

    if attn_ref is not None:
        # TODO(synk): for Lk not a multiple of 128 this store is lane-masked; at production
        # sequence lengths (Lk % 128 == 0) it is lane-dense automatically.
        attn_ref[...] = P.astype(attn_ref.dtype)

    out = lax.dot_general(
        P.astype(jnp.bfloat16), V3.astype(jnp.bfloat16),
        dimension_numbers=(((2,), (1,)), ((0,), (0,))),
        preferred_element_type=jnp.float32)                    # (Bb, Lq, D)  f32
    out_ref[...] = out.astype(out_ref.dtype)


def attention_forward(query, key, value, wq, bq, wk, bk, *,
                      batch_block=None, return_attention=True):
    """query: (B, Lq, D); key/value: (B, Lk, D).
    wq/wk: PyTorch-layout Linear weights (D_out, D_in); bq/bk: (D,).
    Returns (result, attention_mat) like the PyTorch module (or just result when
    return_attention=False)."""
    B, Lq, D = query.shape
    _, Lk, _ = key.shape

    if batch_block is None:
        # Process all batches per grid step when B is small (amortize step overhead);
        # keep a >1-step parallel grid axis for large B (megacore sharding on v7x).
        batch_block = B if B <= 8 else max(bb for bb in (1, 2, 4, 8) if B % bb == 0)
    assert B % batch_block == 0, "batch_block must divide B"
    Bb = batch_block

    # Glue (not hot path): pre-transpose weights, cast MXU operands to bf16 (halves DMA),
    # keep biases in f32 (added after the f32 accumulation).
    bf = jnp.bfloat16
    q_b = query.astype(bf)
    k_b = key.astype(bf)
    v_b = value.astype(bf)
    wq_t = wq.T.astype(bf)                  # (D_in, D_out)
    wk_t = wk.T.astype(bf)
    bq_r = bq.reshape(1, D).astype(jnp.float32)
    bk_r = bk.reshape(1, D).astype(jnp.float32)

    grid = (B // Bb,)

    out_shape = [jax.ShapeDtypeStruct((B, Lq, D), jnp.float32)]
    out_specs = [pl.BlockSpec((Bb, Lq, D), lambda b: (b, 0, 0))]
    if return_attention:
        out_shape.append(jax.ShapeDtypeStruct((B, Lq, Lk), jnp.float32))
        out_specs.append(pl.BlockSpec((Bb, Lq, Lk), lambda b: (b, 0, 0)))

    outs = pl.pallas_call(
        _attention_kernel,
        out_shape=tuple(out_shape),
        grid_spec=pltpu.PrefetchScalarGridSpec(
            num_scalar_prefetch=0,
            grid=grid,
            in_specs=[
                pl.BlockSpec((Bb, Lq, D), lambda b: (b, 0, 0)),   # query
                pl.BlockSpec((Bb, Lk, D), lambda b: (b, 0, 0)),   # key
                pl.BlockSpec((Bb, Lk, D), lambda b: (b, 0, 0)),   # value
                pl.BlockSpec((D, D), lambda b: (0, 0)),           # wq (transposed, bf16)
                pl.BlockSpec((1, D), lambda b: (0, 0)),           # bq (f32)
                pl.BlockSpec((D, D), lambda b: (0, 0)),           # wk (transposed, bf16)
                pl.BlockSpec((1, D), lambda b: (0, 0)),           # bk (f32)
            ],
            out_specs=out_specs,
        ),
        compiler_params=pltpu.CompilerParams(
            dimension_semantics=("parallel",),
            vmem_limit_bytes=32 * 1024 * 1024,
        ),
    )(q_b, k_b, v_b, wq_t, bq_r, wk_t, bk_r)

    if return_attention:
        return outs[0], outs[1]
    return outs[0]


def _reference(query, key, value, wq, bq, wk, bk):
    """Pure-JAX reference mirroring the kernel's bf16-operand / f32-accumulate boundaries."""
    bf = jnp.bfloat16
    wq_t = wq.T.astype(bf)
    wk_t = wk.T.astype(bf)
    Q = jnp.einsum("bld,de->ble", query.astype(bf), wq_t,
                   preferred_element_type=jnp.float32) + bq
    K = jnp.einsum("bld,de->ble", key.astype(bf), wk_t,
                   preferred_element_type=jnp.float32) + bk
    V = jnp.einsum("bld,de->ble", value.astype(bf), wk_t,
                   preferred_element_type=jnp.float32) + bk       # value uses key_embedder
    S = jnp.einsum("bqd,bkd->bqk", Q.astype(bf), K.astype(bf),
                   preferred_element_type=jnp.float32)
    P = jax.nn.softmax(S, axis=-1)
    out = jnp.einsum("bqk,bkd->bqd", P.astype(bf), V.astype(bf),
                     preferred_element_type=jnp.float32)
    return out, P


if __name__ == "__main__":
    feature_dim = 128   # matches module default
    B, Lq, Lk = 2, 8, 8

    key_rng = jax.random.PRNGKey(0)
    kq, kk, kv, kw1, kb1, kw2, kb2 = jax.random.split(key_rng, 7)

    query = jax.random.normal(kq, (B, Lq, feature_dim), dtype=jnp.float32)
    key_x = jax.random.normal(kk, (B, Lk, feature_dim), dtype=jnp.float32)
    value = jax.random.normal(kv, (B, Lk, feature_dim), dtype=jnp.float32)

    # Deterministic parameter init (PyTorch Linear-style uniform bound).
    bound = 1.0 / (feature_dim ** 0.5)
    wq = jax.random.uniform(kw1, (feature_dim, feature_dim), jnp.float32, -bound, bound)
    bq = jax.random.uniform(kb1, (feature_dim,), jnp.float32, -bound, bound)
    wk = jax.random.uniform(kw2, (feature_dim, feature_dim), jnp.float32, -bound, bound)
    bk = jax.random.uniform(kb2, (feature_dim,), jnp.float32, -bound, bound)

    result, attn = attention_forward(query, key_x, value, wq, bq, wk, bk)
    jax.block_until_ready((result, attn))

    # Exercise the attention-matrix-free fast path as well (no P writeback).
    result_only = attention_forward(query, key_x, value, wq, bq, wk, bk,
                                    return_attention=False)
    jax.block_until_ready(result_only)

    ref_result, ref_attn = _reference(query, key_x, value, wq, bq, wk, bk)

    assert result.shape == (B, Lq, feature_dim)
    assert attn.shape == (B, Lq, Lk)
    # Tolerances account for bf16 MXU operands + approx reciprocal in the softmax.
    assert jnp.allclose(result, ref_result, atol=2e-2, rtol=2e-2)
    assert jnp.allclose(attn, ref_attn, atol=1e-2, rtol=1e-2)
    assert jnp.allclose(jnp.sum(attn, axis=-1), 1.0, atol=1e-2)
    assert jnp.allclose(result_only, result, atol=1e-5, rtol=1e-5)

    print("KERNEL_OK")
</pallas_src>

<mosaic_0001>
module attributes {stable_mosaic.version = 11 : i64} {
  func.func @_attention_kernel(%arg0: i32, %arg1: memref<2x8x128xbf16, #tpu.memory_space<vmem>>, %arg2: memref<2x8x128xbf16, #tpu.memory_space<vmem>>, %arg3: memref<2x8x128xbf16, #tpu.memory_space<vmem>>, %arg4: memref<128x128xbf16, #tpu.memory_space<vmem>>, %arg5: memref<1x128xf32, #tpu.memory_space<vmem>>, %arg6: memref<128x128xbf16, #tpu.memory_space<vmem>>, %arg7: memref<1x128xf32, #tpu.memory_space<vmem>>, %arg8: memref<2x8x128xf32, #tpu.memory_space<vmem>>, %arg9: memref<2x8x8xf32, #tpu.memory_space<vmem>>) attributes {dimension_semantics = [#tpu.dimension_semantics<parallel>], iteration_bounds = array<i64: 1>, scalar_prefetch = 0 : i64, scratch_operands = 0 : i64, tpu.core_type = #tpu.core_type<tc>, window_params = [{transform_indices = @transform_0, window_bounds = array<i64: 2, 8, 128>}, {transform_indices = @transform_1, window_bounds = array<i64: 2, 8, 128>}, {transform_indices = @transform_2, window_bounds = array<i64: 2, 8, 128>}, {pipeline_mode = #tpu.pipeline_mode<synchronous>, transform_indices = @transform_3, window_bounds = array<i64: 128, 128>}, {pipeline_mode = #tpu.pipeline_mode<synchronous>, transform_indices = @transform_4, window_bounds = array<i64: 1, 128>}, {pipeline_mode = #tpu.pipeline_mode<synchronous>, transform_indices = @transform_5, window_bounds = array<i64: 128, 128>}, {pipeline_mode = #tpu.pipeline_mode<synchronous>, transform_indices = @transform_6, window_bounds = array<i64: 1, 128>}, {transform_indices = @transform_7, window_bounds = array<i64: 2, 8, 128>}, {transform_indices = @transform_8, window_bounds = array<i64: 2, 8, 8>}]} {
    %c0 = arith.constant 0 : index
    %c0_0 = arith.constant 0 : index
    %0 = vector.load %arg4[%c0, %c0_0] : memref<128x128xbf16, #tpu.memory_space<vmem>>, vector<128x128xbf16>
    %c0_1 = arith.constant 0 : index
    %c0_2 = arith.constant 0 : index
    %1 = vector.load %arg6[%c0_1, %c0_2] : memref<128x128xbf16, #tpu.memory_space<vmem>>, vector<128x128xbf16>
    %c0_3 = arith.constant 0 : index
    %c0_4 = arith.constant 0 : index
    %2 = vector.load %arg5[%c0_3, %c0_4] : memref<1x128xf32, #tpu.memory_space<vmem>>, vector<1x128xf32>
    %c0_5 = arith.constant 0 : index
    %c0_6 = arith.constant 0 : index
    %3 = vector.load %arg7[%c0_5, %c0_6] : memref<1x128xf32, #tpu.memory_space<vmem>>, vector<1x128xf32>
    %c0_7 = arith.constant 0 : index
    %c0_8 = arith.constant 0 : index
    %c0_9 = arith.constant 0 : index
    %4 = vector.load %arg1[%c0_7, %c0_8, %c0_9] : memref<2x8x128xbf16, #tpu.memory_space<vmem>>, vector<2x8x128xbf16>
    %5 = vector.shape_cast %4 : vector<2x8x128xbf16> to vector<16x128xbf16>
    %c0_10 = arith.constant 0 : index
    %c0_11 = arith.constant 0 : index
    %c0_12 = arith.constant 0 : index
    %6 = vector.load %arg2[%c0_10, %c0_11, %c0_12] : memref<2x8x128xbf16, #tpu.memory_space<vmem>>, vector<2x8x128xbf16>
    %7 = vector.shape_cast %6 : vector<2x8x128xbf16> to vector<16x128xbf16>
    %c0_13 = arith.constant 0 : index
    %c0_14 = arith.constant 0 : index
    %c0_15 = arith.constant 0 : index
    %8 = vector.load %arg3[%c0_13, %c0_14, %c0_15] : memref<2x8x128xbf16, #tpu.memory_space<vmem>>, vector<2x8x128xbf16>
    %9 = vector.shape_cast %8 : vector<2x8x128xbf16> to vector<16x128xbf16>
    %10 = tpu.concatenate %7, %9 in 0 : vector<16x128xbf16>, vector<16x128xbf16> -> vector<32x128xbf16>
    %cst = arith.constant dense<0.000000e+00> : vector<16x128xf32>
    %11 = tpu.matmul %5, %0, %cst {dimension_numbers = #tpu.dot_dimension_numbers<[1], [0], [0], [1], [0, 0, 1, 1], [], []>} : vector<16x128xbf16>, vector<128x128xbf16>, vector<16x128xf32> -> vector<16x128xf32>
    %12 = vector.broadcast %2 : vector<1x128xf32> to vector<16x128xf32>
    %13 = arith.addf %11, %12 : vector<16x128xf32>
    %cst_16 = arith.constant dense<0.000000e+00> : vector<32x128xf32>
    %14 = tpu.matmul %10, %1, %cst_16 {dimension_numbers = #tpu.dot_dimension_numbers<[1], [0], [0], [1], [0, 0, 1, 1], [], []>} : vector<32x128xbf16>, vector<128x128xbf16>, vector<32x128xf32> -> vector<32x128xf32>
    %15 = vector.broadcast %3 : vector<1x128xf32> to vector<32x128xf32>
    %16 = arith.addf %14, %15 : vector<32x128xf32>
    %17 = vector.shape_cast %13 : vector<16x128xf32> to vector<2x8x128xf32>
    %18 = vector.extract_strided_slice %16 {offsets = [0, 0], sizes = [16, 128], strides = [1, 1]} : vector<32x128xf32> to vector<16x128xf32>
    %19 = vector.shape_cast %18 : vector<16x128xf32> to vector<2x8x128xf32>
    %20 = vector.extract_strided_slice %16 {offsets = [16, 0], sizes = [16, 128], strides = [1, 1]} : vector<32x128xf32> to vector<16x128xf32>
    %21 = vector.shape_cast %20 : vector<16x128xf32> to vector<2x8x128xf32>
    %22 = arith.truncf %17 : vector<2x8x128xf32> to vector<2x8x128xbf16>
    %23 = arith.truncf %19 : vector<2x8x128xf32> to vector<2x8x128xbf16>
    %cst_17 = arith.constant dense<0.000000e+00> : vector<2x8x8xf32>
    %24 = tpu.matmul %22, %23, %cst_17 {dimension_numbers = #tpu.dot_dimension_numbers<[2], [2], [1], [1], [0, 0, 0, 1, 1, 1], [0], [0]>} : vector<2x8x128xbf16>, vector<2x8x128xbf16>, vector<2x8x8xf32> -> vector<2x8x8xf32>
    %cst_18 = arith.constant dense<0xFF800000> : vector<2x8xf32>
    %25 = vector.multi_reduction <maximumf>, %24, %cst_18 [2] : vector<2x8x8xf32> to vector<2x8xf32>
    %26 = vector.shape_cast %25 : vector<2x8xf32> to vector<2x8x1xf32>
    %27 = vector.broadcast %26 : vector<2x8x1xf32> to vector<2x8x8xf32>
    %28 = arith.subf %24, %27 : vector<2x8x8xf32>
    %29 = math.exp %28 : vector<2x8x8xf32>
    %cst_19 = arith.constant dense<0.000000e+00> : vector<2x8xf32>
    %30 = vector.multi_reduction <add>, %29, %cst_19 [2] : vector<2x8x8xf32> to vector<2x8xf32>
    %31 = vector.shape_cast %30 : vector<2x8xf32> to vector<2x8x1xf32>
    %32 = tpu.reciprocal %31 {approx = true} : vector<2x8x1xf32> -> vector<2x8x1xf32>
    %33 = vector.broadcast %32 : vector<2x8x1xf32> to vector<2x8x8xf32>
    %34 = arith.mulf %29, %33 : vector<2x8x8xf32>
    %c0_20 = arith.constant 0 : index
    %c0_21 = arith.constant 0 : index
    %c0_22 = arith.constant 0 : index
    %35 = vector.load %arg9[%c0_20, %c0_21, %c0_22] : memref<2x8x8xf32, #tpu.memory_space<vmem>>, vector<2x8x8xf32>
    tpu.vector_store %arg9[%c0_20, %c0_21, %c0_22], %34 {strides = array<i32>} : memref<2x8x8xf32, #tpu.memory_space<vmem>>, vector<2x8x8xf32>,
    %36 = arith.truncf %34 : vector<2x8x8xf32> to vector<2x8x8xbf16>
    %37 = arith.truncf %21 : vector<2x8x128xf32> to vector<2x8x128xbf16>
    %cst_23 = arith.constant dense<0.000000e+00> : vector<2x8x128xf32>
    %38 = tpu.matmul %36, %37, %cst_23 {dimension_numbers = #tpu.dot_dimension_numbers<[2], [1], [1], [2], [0, 0, 0, 1, 1, 2], [0], [0]>} : vector<2x8x8xbf16>, vector<2x8x128xbf16>, vector<2x8x128xf32> -> vector<2x8x128xf32>
    %c0_24 = arith.constant 0 : index
    %c0_25 = arith.constant 0 : index
    %c0_26 = arith.constant 0 : index
    %39 = vector.load %arg8[%c0_24, %c0_25, %c0_26] : memref<2x8x128xf32, #tpu.memory_space<vmem>>, vector<2x8x128xf32>
    tpu.vector_store %arg8[%c0_24, %c0_25, %c0_26], %38 {strides = array<i32>} : memref<2x8x128xf32, #tpu.memory_space<vmem>>, vector<2x8x128xf32>,
    return
  }
  func.func @transform_0(%arg0: i32) -> (i32, i32, i32) {
    %c0_i32 = arith.constant 0 : i32
    %c0_i32_0 = arith.constant 0 : i32
    %c0_i32_1 = arith.constant 0 : i32
    return %arg0, %c0_i32, %c0_i32_0 : i32, i32, i32
  }
  func.func @transform_1(%arg0: i32) -> (i32, i32, i32) {
    %c0_i32 = arith.constant 0 : i32
    %c0_i32_0 = arith.constant 0 : i32
    %c0_i32_1 = arith.constant 0 : i32
    return %arg0, %c0_i32, %c0_i32_0 : i32, i32, i32
  }
  func.func @transform_2(%arg0: i32) -> (i32, i32, i32) {
    %c0_i32 = arith.constant 0 : i32
    %c0_i32_0 = arith.constant 0 : i32
    %c0_i32_1 = arith.constant 0 : i32
    return %arg0, %c0_i32, %c0_i32_0 : i32, i32, i32
  }
  func.func @transform_3(%arg0: i32) -> (i32, i32) {
    %c0_i32 = arith.constant 0 : i32
    %c0_i32_0 = arith.constant 0 : i32
    %c0_i32_1 = arith.constant 0 : i32
    return %c0_i32, %c0_i32_0 : i32, i32
  }
  func.func @transform_4(%arg0: i32) -> (i32, i32) {
    %c0_i32 = arith.constant 0 : i32
    %c0_i32_0 = arith.constant 0 : i32
    %c0_i32_1 = arith.constant 0 : i32
    return %c0_i32, %c0_i32_0 : i32, i32
  }
  func.func @transform_5(%arg0: i32) -> (i32, i32) {
    %c0_i32 = arith.constant 0 : i32
    %c0_i32_0 = arith.constant 0 : i32
    %c0_i32_1 = arith.constant 0 : i32
    return %c0_i32, %c0_i32_0 : i32, i32
  }
  func.func @transform_6(%arg0: i32) -> (i32, i32) {
    %c0_i32 = arith.constant 0 : i32
    %c0_i32_0 = arith.constant 0 : i32
    %c0_i32_1 = arith.constant 0 : i32
    return %c0_i32, %c0_i32_0 : i32, i32
  }
  func.func @transform_7(%arg0: i32) -> (i32, i32, i32) {
    %c0_i32 = arith.constant 0 : i32
    %c0_i32_0 = arith.constant 0 : i32
    %c0_i32_1 = arith.constant 0 : i32
    return %arg0, %c0_i32, %c0_i32_0 : i32, i32, i32
  }
  func.func @transform_8(%arg0: i32) -> (i32, i32, i32) {
    %c0_i32 = arith.constant 0 : i32
    %c0_i32_0 = arith.constant 0 : i32
    %c0_i32_1 = arith.constant 0 : i32
    return %arg0, %c0_i32, %c0_i32_0 : i32, i32, i32
  }
}

</mosaic_0001>

<llo_original>
// kernel: tpu_custom_call.1
$region0: #{tpu_custom_call.1}
  #allocation0 [shape = 'u32[]', space=smem, size = 0x4, offset = 0x4, fixed_abs, tag = 'smem constant byte address 0x4 - core index']
  #allocation1 [shape = 'u32[144,128]{1,0:T(1,128)}', space=vmem, size = 0x12000, scoped, tag = 'internal scratch']
  %s0 = inlined_call_operand.hbm [shape: bf16[2,8,128], index: 0, kind: input, shape index: {}]
  %s1 = inlined_call_operand.hbm [shape: bf16[2,8,128], index: 1, kind: input, shape index: {}]
  %s2 = inlined_call_operand.hbm [shape: bf16[2,8,128], index: 2, kind: input, shape index: {}]
  %s3 = inlined_call_operand.hbm [shape: bf16[128,128], index: 3, kind: input, shape index: {}]
  %s4 = inlined_call_operand.vmem [shape: f32[1,128], index: 4, kind: input, shape index: {}]
  %s5 = inlined_call_operand.hbm [shape: bf16[128,128], index: 5, kind: input, shape index: {}]
  %s6 = inlined_call_operand.vmem [shape: f32[1,128], index: 6, kind: input, shape index: {}]
  %s7 = inlined_call_operand.hbm [shape: f32[2,8,128], index: 7, kind: output, shape index: {0}]
  %s8 = inlined_call_operand.hbm [shape: f32[2,8,8], index: 8, kind: output, shape index: {1}]
  %9 = xla_tuple %s7, %s8
  %s10 = sld [smem:[#allocation0]]
  $region66: #{tpu_custom_call.1} parent=0
    _
  %s12 = ssub.s32 1, %s10
  %s13 = scalar_select 0, %s12, %s10
  $region1: #{tpu_custom_call.1} parent=0
    #allocation2 [shape = 'u8[4096]{0}', space=vmem, size = 0x1000, scoped, tag = 'input window, operand 0, single buffered']
    #allocation3 [shape = 's32[1]{0}', space=sflag, size = 0x4, scoped, tag = 'scoped memory for tpu_custom_call.1']
    #allocation4 [shape = 's32[1]{0}', space=sflag, size = 0x4, scoped, tag = 'scoped memory for tpu_custom_call.1']
    #allocation5 [shape = 'u8[4096]{0}', space=vmem, size = 0x1000, scoped, tag = 'input window, operand 1, single buffered']
    #allocation6 [shape = 's32[1]{0}', space=sflag, size = 0x4, scoped, tag = 'scoped memory for tpu_custom_call.1']
    #allocation7 [shape = 'u8[4096]{0}', space=vmem, size = 0x1000, scoped, tag = 'input window, operand 2, single buffered']
    #allocation8 [shape = 'u8[32768]{0}', space=vmem, size = 0x8000, scoped, tag = 'input window, operand 3, single buffered']
    #allocation9 [shape = 's32[1]{0}', space=sflag, size = 0x4, scoped, tag = 'scoped memory for tpu_custom_call.1']
    #allocation10 [shape = 'u8[32768]{0}', space=vmem, size = 0x8000, scoped, tag = 'input window, operand 5, single buffered']
    #allocation11 [shape = 'u8[8192]{0}', space=vmem, size = 0x2000, scoped, tag = 'output window, operand 0, single buffered']
    #allocation12 [shape = 'u8[8192]{0}', space=vmem, size = 0x2000, scoped, tag = 'output window, operand 1, single buffered']
    #allocation13 [shape = 's32[1]{0}', space=sflag, size = 0x4, scoped, tag = 'scoped memory for tpu_custom_call.1']
    %14 = vsyncpa [#allocation3], 0
    %15 = vsyncpa [#allocation6], 0
    %16 = vsyncpa [#allocation9], 0
    %17 = vsyncpa [#allocation4], 0
    %18 = vsyncpa [#allocation13], 0
    // Predicated region
    $region2: #{tpu_custom_call.1} parent=1 // pred_check
      _
    $region3: #{tpu_custom_call.1} parent=1 // pred_check_branch
      %20 = sbr.rel (0) target = $region5
    $region4: #{tpu_custom_call.1} parent=1 // pred_region
      %s22 = ssub.s32 128, 128
      %23 = vsyncadd [#allocation3], %s22
      %s24 = sshll.u32 [#allocation2], 4
      %s25 = int_to_ptr.vmem [resolvable:$true] %s24
      %30 = dma.hbm_to_vmem [thread:$0]  %s0, 128, %s25, [#allocation3], 64, 64, 4
    $region5: #{tpu_custom_call.1} parent=1 // pred_fallthru
      _
    // Predicated region
    $region6: #{tpu_custom_call.1} parent=1 // pred_check
      _
    $region7: #{tpu_custom_call.1} parent=1 // pred_check_branch
      %32 = sbr.rel (0) target = $region9
    $region8: #{tpu_custom_call.1} parent=1 // pred_region
      %s34 = ssub.s32 128, 128
      %35 = vsyncadd [#allocation6], %s34
      %s36 = sshll.u32 [#allocation5], 4
      %s37 = int_to_ptr.vmem [resolvable:$true] %s36
      %42 = dma.hbm_to_vmem [thread:$0]  %s1, 128, %s37, [#allocation6], 64, 64, 4
    $region9: #{tpu_custom_call.1} parent=1 // pred_fallthru
      _
    // Predicated region
    $region10: #{tpu_custom_call.1} parent=1 // pred_check
      _
    $region11: #{tpu_custom_call.1} parent=1 // pred_check_branch
      %44 = sbr.rel (0) target = $region13
    $region12: #{tpu_custom_call.1} parent=1 // pred_region
      %s46 = ssub.s32 128, 128
      %47 = vsyncadd [#allocation6], %s46
      %s48 = sshll.u32 [#allocation7], 4
      %s49 = int_to_ptr.vmem [resolvable:$true] %s48
      %54 = dma.hbm_to_vmem [thread:$0]  %s2, 128, %s49, [#allocation6], 64, 64, 4
    $region13: #{tpu_custom_call.1} parent=1 // pred_fallthru
      _
    // Predicated region
    $region14: #{tpu_custom_call.1} parent=1 // pred_check
      _
    $region15: #{tpu_custom_call.1} parent=1 // pred_check_branch
      %56 = sbr.rel (0) target = $region17
    $region16: #{tpu_custom_call.1} parent=1 // pred_region
      %s58 = ssub.s32 1024, 1024
      %59 = vsyncadd [#allocation9], %s58
      %s60 = sshll.u32 [#allocation8], 4
      %s61 = int_to_ptr.vmem [resolvable:$true] %s60
      %66 = dma.hbm_to_vmem [thread:$0]  %s3, 1024, %s61, [#allocation9], 64, 64, 4
    $region17: #{tpu_custom_call.1} parent=1 // pred_fallthru
      _
    // Predicated region
    $region18: #{tpu_custom_call.1} parent=1 // pred_check
      _
    $region19: #{tpu_custom_call.1} parent=1 // pred_check_branch
      %68 = sbr.rel (0) target = $region21
    $region20: #{tpu_custom_call.1} parent=1 // pred_region
      _
    $region21: #{tpu_custom_call.1} parent=1 // pred_fallthru
      _
    // Predicated region
    $region22: #{tpu_custom_call.1} parent=1 // pred_check
      _
    $region23: #{tpu_custom_call.1} parent=1 // pred_check_branch
      %70 = sbr.rel (0) target = $region25
    $region24: #{tpu_custom_call.1} parent=1 // pred_region
      %s72 = ssub.s32 1024, 1024
      %73 = vsyncadd [#allocation9], %s72
      %s74 = sshll.u32 [#allocation10], 4
      %s75 = int_to_ptr.vmem [resolvable:$true] %s74
      %80 = dma.hbm_to_vmem [thread:$0]  %s5, 1024, %s75, [#allocation9], 64, 64, 4
    $region25: #{tpu_custom_call.1} parent=1 // pred_fallthru
      _
    // Predicated region
    $region26: #{tpu_custom_call.1} parent=1 // pred_check
      _
    $region27: #{tpu_custom_call.1} parent=1 // pred_check_branch
      %82 = sbr.rel (0) target = $region29
    $region28: #{tpu_custom_call.1} parent=1 // pred_region
      _
    $region29: #{tpu_custom_call.1} parent=1 // pred_fallthru
      _
    // Predicated region
    $region30: #{tpu_custom_call.1} parent=1 // pred_check
      _
    $region31: #{tpu_custom_call.1} parent=1 // pred_check_branch
      %84 = sbr.rel (0) target = $region33
    $region32: #{tpu_custom_call.1} parent=1 // pred_region
      %85 = dma.done [#allocation3], 128
    $region33: #{tpu_custom_call.1} parent=1 // pred_fallthru
      _
    // Predicated region
    $region34: #{tpu_custom_call.1} parent=1 // pred_check
      _
    $region35: #{tpu_custom_call.1} parent=1 // pred_check_branch
      %87 = sbr.rel (0) target = $region37
    $region36: #{tpu_custom_call.1} parent=1 // pred_region
      %88 = dma.done [#allocation6], 128
    $region37: #{tpu_custom_call.1} parent=1 // pred_fallthru
      _
    // Predicated region
    $region38: #{tpu_custom_call.1} parent=1 // pred_check
      _
    $region39: #{tpu_custom_call.1} parent=1 // pred_check_branch
      %90 = sbr.rel (0) target = $region41
    $region40: #{tpu_custom_call.1} parent=1 // pred_region
      %91 = dma.done [#allocation6], 128
    $region41: #{tpu_custom_call.1} parent=1 // pred_fallthru
      _
    // Predicated region
    $region42: #{tpu_custom_call.1} parent=1 // pred_check
      _
    $region43: #{tpu_custom_call.1} parent=1 // pred_check_branch
      %93 = sbr.rel (0) target = $region45
    $region44: #{tpu_custom_call.1} parent=1 // pred_region
      %94 = dma.done [#allocation9], 1024
    $region45: #{tpu_custom_call.1} parent=1 // pred_fallthru
      _
    // Predicated region
    $region46: #{tpu_custom_call.1} parent=1 // pred_check
      _
    $region47: #{tpu_custom_call.1} parent=1 // pred_check_branch
      %96 = sbr.rel (0) target = $region49
    $region48: #{tpu_custom_call.1} parent=1 // pred_region
      %97 = dma.done [#allocation9], 1024
    $region49: #{tpu_custom_call.1} parent=1 // pred_fallthru
      _
    %v99 = vld [vmem:[#allocation8] sm:$0xf]
    %v100 = vld [vmem:[#allocation8 + $0x4] sm:$0xf]
    %v101 = vld [vmem:[#allocation8 + $0x8] sm:$0xf]
    %v102 = vld [vmem:[#allocation8 + $0xc] sm:$0xf]
    %v103 = vld [vmem:[#allocation8 + $0x10] sm:$0xf]
    %v104 = vld [vmem:[#allocation8 + $0x14] sm:$0xf]
    %v105 = vld [vmem:[#allocation8 + $0x18] sm:$0xf]
    %v106 = vld [vmem:[#allocation8 + $0x1c] sm:$0xf]
    %v107 = vld [vmem:[#allocation8 + $0x20] sm:$0xf]
    %v108 = vld [vmem:[#allocation8 + $0x24] sm:$0xf]
    %v109 = vld [vmem:[#allocation8 + $0x28] sm:$0xf]
    %v110 = vld [vmem:[#allocation8 + $0x2c] sm:$0xf]
    %v111 = vld [vmem:[#allocation8 + $0x30] sm:$0xf]
    %v112 = vld [vmem:[#allocation8 + $0x34] sm:$0xf]
    %v113 = vld [vmem:[#allocation8 + $0x38] sm:$0xf]
    %v114 = vld [vmem:[#allocation8 + $0x3c] sm:$0xf]
    %v115 = vld [vmem:[#allocation10] sm:$0xf]
    %v116 = vld [vmem:[#allocation10 + $0x4] sm:$0xf]
    %v117 = vld [vmem:[#allocation10 + $0x8] sm:$0xf]
    %v118 = vld [vmem:[#allocation10 + $0xc] sm:$0xf]
    %v119 = vld [vmem:[#allocation10 + $0x10] sm:$0xf]
    %v120 = vld [vmem:[#allocation10 + $0x14] sm:$0xf]
    %v121 = vld [vmem:[#allocation10 + $0x18] sm:$0xf]
    %v122 = vld [vmem:[#allocation10 + $0x1c] sm:$0xf]
    %v123 = vld [vmem:[#allocation10 + $0x20] sm:$0xf]
    %v124 = vld [vmem:[#allocation10 + $0x24] sm:$0xf]
    %v125 = vld [vmem:[#allocation10 + $0x28] sm:$0xf]
    %v126 = vld [vmem:[#allocation10 + $0x2c] sm:$0xf]
    %v127 = vld [vmem:[#allocation10 + $0x30] sm:$0xf]
    %v128 = vld [vmem:[#allocation10 + $0x34] sm:$0xf]
    %v129 = vld [vmem:[#allocation10 + $0x38] sm:$0xf]
    %v130 = vld [vmem:[#allocation10 + $0x3c] sm:$0xf]
    %v131 = vld [vmem:[%s4] sm:$0x1]
    %v132 = vld [vmem:[%s6] sm:$0x1]
    %v133 = vld [vmem:[#allocation2] sm:$0xf]
    %v134 = vld [vmem:[#allocation2 + $0x4] sm:$0xf]
    %v135 = vld [vmem:[#allocation5] sm:$0xf]
    %v136 = vld [vmem:[#allocation5 + $0x4] sm:$0xf]
    %v137 = vld [vmem:[#allocation7] sm:$0xf]
    %v138 = vld [vmem:[#allocation7 + $0x4] sm:$0xf]
    %v141 = vunpack.c.l.b16 %v135
    %v142 = vunpack.c.l.b16 %v136
    %v143 = vpack.c.b16 %v142, %v141
    %v147 = vunpack.c.l.b16 %v137
    %v148 = vunpack.c.l.b16 %v138
    %v149 = vpack.c.b16 %v148, %v147
    %v152 = vlaneseq
    %v153 = vshrl.u32 %v152, 7
    %v154 = vsub.s32 0, %v153
    %v155 = vrot.slane %v131, %v154
    %v159 = vunpack.c.l.b16 %v133
    %v160 = vunpack.c.l.b16 %v134
    %v161 = vpack.c.b16 %v160, %v159
    %v179 = vunpack.c.l.b16 %v99
    %v180 = vunpack.c.l.b16 %v100
    %v181 = vunpack.c.l.b16 %v101
    %v182 = vunpack.c.l.b16 %v102
    %v183 = vunpack.c.l.b16 %v103
    %v184 = vunpack.c.l.b16 %v104
    %v185 = vunpack.c.l.b16 %v105
    %v186 = vunpack.c.l.b16 %v106
    %v187 = vunpack.c.l.b16 %v107
    %v188 = vunpack.c.l.b16 %v108
    %v189 = vunpack.c.l.b16 %v109
    %v190 = vunpack.c.l.b16 %v110
    %v191 = vunpack.c.l.b16 %v111
    %v192 = vunpack.c.l.b16 %v112
    %v193 = vunpack.c.l.b16 %v113
    %v194 = vunpack.c.l.b16 %v114
    %v195 = vpack.c.b16 %v180, %v179
    %v196 = vpack.c.b16 %v182, %v181
    %v197 = vpack.c.b16 %v184, %v183
    %v198 = vpack.c.b16 %v186, %v185
    %v199 = vpack.c.b16 %v188, %v187
    %v200 = vpack.c.b16 %v190, %v189
    %v201 = vpack.c.b16 %v192, %v191
    %v202 = vpack.c.b16 %v194, %v193
    %211 = vmatprep.subr.bf16.mxu0 0
    %212 = vmatpush1.bf16.msra.mxu0 %v195
    %213 = vmatprep.subr.bf16.mxu0 0
    %214 = vmatpush1.bf16.msra.mxu0 %v196
    %215 = vmatprep.subr.bf16.mxu0 0
    %216 = vmatpush1.bf16.msra.mxu0 %v197
    %217 = vmatprep.subr.bf16.mxu0 0
    %218 = vmatpush1.bf16.msra.mxu0 %v198
    %219 = vmatprep.subr.bf16.mxu0 0
    %220 = vmatpush1.bf16.msra.mxu0 %v199
    %221 = vmatprep.subr.bf16.mxu0 0
    %222 = vmatpush1.bf16.msra.mxu0 %v200
    %223 = vmatprep.subr.bf16.mxu0 0
    %224 = vmatpush1.bf16.msra.mxu0 %v201
    %225 = vmatprep.subr.bf16.mxu0 0
    %226 = vmatpush1.bf16.msra.mxu0 %v202
    %227 = vmatprep.subr.bf16.mxu0 0
    %228 = vmatpush1.bf16.msra.mxu0 0
    %229 = vmatprep.subr.bf16.mxu0 0
    %230 = vmatpush1.bf16.msra.mxu0 0
    %231 = vmatprep.subr.bf16.mxu0 0
    %232 = vmatpush1.bf16.msra.mxu0 0
    %233 = vmatprep.subr.bf16.mxu0 0
    %234 = vmatpush1.bf16.msra.mxu0 0
    %235 = vmatprep.subr.bf16.mxu0 0
    %236 = vmatpush1.bf16.msra.mxu0 0
    %237 = vmatprep.subr.bf16.mxu0 0
    %238 = vmatpush1.bf16.msra.mxu0 0
    %239 = vmatprep.subr.bf16.mxu0 0
    %240 = vmatpush1.bf16.msra.mxu0 0
    %241 = vmatprep.subr.bf16.mxu0 0
    %242 = vmatpush1.bf16.msra.mxu0 0
    %243 = vmatprep.mubr.bf16.mxu0 0
    %244 = vmatmul.mubr.bf16.gmra.mrb[0].mxu0 %v161
    %v245 = vpop.f32.mrb[0].mxu0
    %v246 = vadd.f32 %v155, %v245
    %v247 = vpop.f32.mrb[0].mxu0
    %v248 = vpop.f32.mrb[0].mxu0
    %v249 = vadd.f32 %v155, %v248
    %v250 = vpop.f32.mrb[0].mxu0
    %251 = vdwg.mxu0
    %v253 = vlaneseq
    %v254 = vshrl.u32 %v253, 7
    %v255 = vsub.s32 0, %v254
    %v256 = vrot.slane %v132, %v255
    %v274 = vunpack.c.l.b16 %v115
    %v275 = vunpack.c.l.b16 %v116
    %v276 = vunpack.c.l.b16 %v117
    %v277 = vunpack.c.l.b16 %v118
    %v278 = vunpack.c.l.b16 %v119
    %v279 = vunpack.c.l.b16 %v120
    %v280 = vunpack.c.l.b16 %v121
    %v281 = vunpack.c.l.b16 %v122
    %v282 = vunpack.c.l.b16 %v123
    %v283 = vunpack.c.l.b16 %v124
    %v284 = vunpack.c.l.b16 %v125
    %v285 = vunpack.c.l.b16 %v126
    %v286 = vunpack.c.l.b16 %v127
    %v287 = vunpack.c.l.b16 %v128
    %v288 = vunpack.c.l.b16 %v129
    %v289 = vunpack.c.l.b16 %v130
    %v290 = vpack.c.b16 %v275, %v274
    %v291 = vpack.c.b16 %v277, %v276
    %v292 = vpack.c.b16 %v279, %v278
    %v293 = vpack.c.b16 %v281, %v280
    %v294 = vpack.c.b16 %v283, %v282
    %v295 = vpack.c.b16 %v285, %v284
    %v296 = vpack.c.b16 %v287, %v286
    %v297 = vpack.c.b16 %v289, %v288
    %306 = vmatprep.subr.bf16.mxu0 0
    %307 = vmatpush1.bf16.msra.mxu0 %v290
    %308 = vmatprep.subr.bf16.mxu0 0
    %309 = vmatpush1.bf16.msra.mxu0 %v291
    %310 = vmatprep.subr.bf16.mxu0 0
    %311 = vmatpush1.bf16.msra.mxu0 %v292
    %312 = vmatprep.subr.bf16.mxu0 0
    %313 = vmatpush1.bf16.msra.mxu0 %v293
    %314 = vmatprep.subr.bf16.mxu0 0
    %315 = vmatpush1.bf16.msra.mxu0 %v294
    %316 = vmatprep.subr.bf16.mxu0 0
    %317 = vmatpush1.bf16.msra.mxu0 %v295
    %318 = vmatprep.subr.bf16.mxu0 0
    %319 = vmatpush1.bf16.msra.mxu0 %v296
    %320 = vmatprep.subr.bf16.mxu0 0
    %321 = vmatpush1.bf16.msra.mxu0 %v297
    %322 = vmatprep.subr.bf16.mxu0 0
    %323 = vmatpush1.bf16.msra.mxu0 0
    %324 = vmatprep.subr.bf16.mxu0 0
    %325 = vmatpush1.bf16.msra.mxu0 0
    %326 = vmatprep.subr.bf16.mxu0 0
    %327 = vmatpush1.bf16.msra.mxu0 0
    %328 = vmatprep.subr.bf16.mxu0 0
    %329 = vmatpush1.bf16.msra.mxu0 0
    %330 = vmatprep.subr.bf16.mxu0 0
    %331 = vmatpush1.bf16.msra.mxu0 0
    %332 = vmatprep.subr.bf16.mxu0 0
    %333 = vmatpush1.bf16.msra.mxu0 0
    %334 = vmatprep.subr.bf16.mxu0 0
    %335 = vmatpush1.bf16.msra.mxu0 0
    %336 = vmatprep.subr.bf16.mxu0 0
    %337 = vmatpush1.bf16.msra.mxu0 0
    %338 = vmatprep.mubr.bf16.mxu0 0
    %339 = vmatmul.mubr.bf16.gmra.mrb[0].mxu0 %v143
    %v340 = vpop.f32.mrb[0].mxu0
    %v341 = vadd.f32 %v256, %v340
    %v342 = vpop.f32.mrb[0].mxu0
    %v343 = vpop.f32.mrb[0].mxu0
    %v344 = vadd.f32 %v256, %v343
    %v345 = vpop.f32.mrb[0].mxu0
    %346 = vmatprep.mubr.bf16.mxu0 0
    %347 = vmatmul.mubr.bf16.gmra.mrb[0].mxu0 %v149
    %v348 = vpop.f32.mrb[0].mxu0
    %v349 = vadd.f32 %v256, %v348
    %v350 = vpop.f32.mrb[0].mxu0
    %v351 = vpop.f32.mrb[0].mxu0
    %v352 = vadd.f32 %v256, %v351
    %v353 = vpop.f32.mrb[0].mxu0
    %354 = vdwg.mxu0
    %v355 = vpack.c.bf16 %v246, %v246
    %v356 = vpack.c.bf16 %v249, %v249
    %v357 = vpack.c.bf16 %v341, %v341
    %v358 = vpack.c.bf16 %v344, %v344
    %359 = vmatprep.subr.bf16.mxu0 0
    %360 = vmatpush1.bf16.xpose.msra.mxu0 %v357
    %361 = vmatprep.subr.bf16.mxu0 0
    %362 = vmatpush1.bf16.xpose.msra.mxu0 0
    %363 = vmatprep.subr.bf16.mxu0 0
    %364 = vmatpush1.bf16.xpose.msra.mxu0 0
    %365 = vmatprep.subr.bf16.mxu0 0
    %366 = vmatpush1.bf16.xpose.msra.mxu0 0
    %367 = vmatprep.subr.bf16.mxu0 0
    %368 = vmatpush1.bf16.xpose.msra.mxu0 0
    %369 = vmatprep.subr.bf16.mxu0 0
    %370 = vmatpush1.bf16.xpose.msra.mxu0 0
    %371 = vmatprep.subr.bf16.mxu0 0
    %372 = vmatpush1.bf16.xpose.msra.mxu0 0
    %373 = vmatprep.subr.bf16.mxu0 0
    %374 = vmatpush1.bf16.xpose.msra.mxu0 0
    %375 = vmatprep.subr.bf16.mxu0 0
    %376 = vmatpush1.bf16.xpose.msra.mxu0 0
    %377 = vmatprep.subr.bf16.mxu0 0
    %378 = vmatpush1.bf16.xpose.msra.mxu0 0
    %379 = vmatprep.subr.bf16.mxu0 0
    %380 = vmatpush1.bf16.xpose.msra.mxu0 0
    %381 = vmatprep.subr.bf16.mxu0 0
    %382 = vmatpush1.bf16.xpose.msra.mxu0 0
    %383 = vmatprep.subr.bf16.mxu0 0
    %384 = vmatpush1.bf16.xpose.msra.mxu0 0
    %385 = vmatprep.subr.bf16.mxu0 0
    %386 = vmatpush1.bf16.xpose.msra.mxu0 0
    %387 = vmatprep.subr.bf16.mxu0 0
    %388 = vmatpush1.bf16.xpose.msra.mxu0 0
    %389 = vmatprep.subr.bf16.mxu0 0
    %390 = vmatpush1.bf16.xpose.msra.mxu0 0
    %391 = vmatprep.mubr.bf16.mxu0 0
    %392 = vmatmul.mubr.bf16.gmra.mrb[0].mxu0 %v355
    %v393 = vpop.f32.mrb[0].mxu0
    %v394 = vadd.f32 0.0, %v393
    %v395 = vpop.f32.mrb[0].mxu0
    %v396 = vpop.f32.mrb[0].mxu0
    %v397 = vpop.f32.mrb[0].mxu0
    %398 = vdwg.mxu0
    %399 = vmatprep.subr.bf16.mxu0 0
    %400 = vmatpush1.bf16.xpose.msra.mxu0 %v358
    %401 = vmatprep.subr.bf16.mxu0 0
    %402 = vmatpush1.bf16.xpose.msra.mxu0 0
    %403 = vmatprep.subr.bf16.mxu0 0
    %404 = vmatpush1.bf16.xpose.msra.mxu0 0
    %405 = vmatprep.subr.bf16.mxu0 0
    %406 = vmatpush1.bf16.xpose.msra.mxu0 0
    %407 = vmatprep.subr.bf16.mxu0 0
    %408 = vmatpush1.bf16.xpose.msra.mxu0 0
    %409 = vmatprep.subr.bf16.mxu0 0
    %410 = vmatpush1.bf16.xpose.msra.mxu0 0
    %411 = vmatprep.subr.bf16.mxu0 0
    %412 = vmatpush1.bf16.xpose.msra.mxu0 0
    %413 = vmatprep.subr.bf16.mxu0 0
    %414 = vmatpush1.bf16.xpose.msra.mxu0 0
    %415 = vmatprep.subr.bf16.mxu0 0
    %416 = vmatpush1.bf16.xpose.msra.mxu0 0
    %417 = vmatprep.subr.bf16.mxu0 0
    %418 = vmatpush1.bf16.xpose.msra.mxu0 0
    %419 = vmatprep.subr.bf16.mxu0 0
    %420 = vmatpush1.bf16.xpose.msra.mxu0 0
    %421 = vmatprep.subr.bf16.mxu0 0
    %422 = vmatpush1.bf16.xpose.msra.mxu0 0
    %423 = vmatprep.subr.bf16.mxu0 0
    %424 = vmatpush1.bf16.xpose.msra.mxu0 0
    %425 = vmatprep.subr.bf16.mxu0 0
    %426 = vmatpush1.bf16.xpose.msra.mxu0 0
    %427 = vmatprep.subr.bf16.mxu0 0
    %428 = vmatpush1.bf16.xpose.msra.mxu0 0
    %429 = vmatprep.subr.bf16.mxu0 0
    %430 = vmatpush1.bf16.xpose.msra.mxu0 0
    %431 = vmatprep.mubr.bf16.mxu0 0
    %432 = vmatmul.mubr.bf16.gmra.mrb[0].mxu0 %v356
    %v433 = vpop.f32.mrb[0].mxu0
    %v434 = vadd.f32 0.0, %v433
    %v435 = vpop.f32.mrb[0].mxu0
    %v436 = vpop.f32.mrb[0].mxu0
    %v437 = vpop.f32.mrb[0].mxu0
    %438 = vdwg.mxu0
    %vm439 = vcmask 64512
    %v440 = vsel %vm439, %v394, -inf
    %441 = vmax.xlane.f32.xlu0 %v440
    %v442 = vpop.xlane.xlu0 %441
    %v443 = vsel %vm439, %v434, -inf
    %444 = vmax.xlane.f32.xlu0 %v443
    %v445 = vpop.xlane.xlu0 %444
    %v446 = vsub.f32 %v394, %v442
    %v447 = vsub.f32 %v434, %v445
    %v448 = vmul.f32 %v446, 1.442695
    %v449 = vpow.pop %v448
    %v450 = vmul.f32 %v447, 1.442695
    %v451 = vpow.pop %v450
    %v452 = vsel %vm439, %v449, 0.0
    %453 = vadd.xlane.f32.xlu0 %v452
    %v454 = vpop.xlane.xlu0 %453
    %v455 = vsel %vm439, %v451, 0.0
    %456 = vadd.xlane.f32.xlu0 %v455
    %v457 = vpop.xlane.xlu0 %456
    %v458 = vrcp.pop %v454
    %v459 = vrcp.pop %v457
    %v460 = vmul.f32 %v449, %v458
    %v461 = vmul.f32 %v451, %v459
    %462 = vst.msk [vmem:[#allocation12] sm:$0xff] %vm439, %v460
    %463 = vst.msk [vmem:[#allocation12 + $0x8] sm:$0xff] %vm439, %v461
    %v464 = vpack.c.bf16 %v460, %v460
    %v465 = vpack.c.bf16 %v461, %v461
    %v466 = vpack.c.bf16 %v349, %v349
    %v467 = vpack.c.bf16 %v352, %v352
    %v469 = vsel %vm439, %v464, 0
    %vm471 = vcmask 1043456
    %v473 = vsel %vm471, %v466, 0
    %475 = vmatprep.subr.bf16.mxu0 0
    %476 = vmatpush1.bf16.msra.mxu0 %v473
    %477 = vmatprep.subr.bf16.mxu0 0
    %478 = vmatpush1.bf16.msra.mxu0 0
    %479 = vmatprep.subr.bf16.mxu0 0
    %480 = vmatpush1.bf16.msra.mxu0 0
    %481 = vmatprep.subr.bf16.mxu0 0
    %482 = vmatpush1.bf16.msra.mxu0 0
    %483 = vmatprep.subr.bf16.mxu0 0
    %484 = vmatpush1.bf16.msra.mxu0 0
    %485 = vmatprep.subr.bf16.mxu0 0
    %486 = vmatpush1.bf16.msra.mxu0 0
    %487 = vmatprep.subr.bf16.mxu0 0
    %488 = vmatpush1.bf16.msra.mxu0 0
    %489 = vmatprep.subr.bf16.mxu0 0
    %490 = vmatpush1.bf16.msra.mxu0 0
    %491 = vmatprep.subr.bf16.mxu0 0
    %492 = vmatpush1.bf16.msra.mxu0 0
    %493 = vmatprep.subr.bf16.mxu0 0
    %494 = vmatpush1.bf16.msra.mxu0 0
    %495 = vmatprep.subr.bf16.mxu0 0
    %496 = vmatpush1.bf16.msra.mxu0 0
    %497 = vmatprep.subr.bf16.mxu0 0
    %498 = vmatpush1.bf16.msra.mxu0 0
    %499 = vmatprep.subr.bf16.mxu0 0
    %500 = vmatpush1.bf16.msra.mxu0 0
    %501 = vmatprep.subr.bf16.mxu0 0
    %502 = vmatpush1.bf16.msra.mxu0 0
    %503 = vmatprep.subr.bf16.mxu0 0
    %504 = vmatpush1.bf16.msra.mxu0 0
    %505 = vmatprep.subr.bf16.mxu0 0
    %506 = vmatpush1.bf16.msra.mxu0 0
    %507 = vmatprep.mubr.bf16.mxu0 0
    %508 = vmatmul.mubr.bf16.gmra.mrb[0].mxu0 %v469
    %v509 = vpop.f32.mrb[0].mxu0
    %v510 = vadd.f32 0.0, %v509
    %v511 = vpop.f32.mrb[0].mxu0
    %v512 = vpop.f32.mrb[0].mxu0
    %v513 = vpop.f32.mrb[0].mxu0
    %514 = vdwg.mxu0
    %v516 = vsel %vm439, %v465, 0
    %v519 = vsel %vm471, %v467, 0
    %521 = vmatprep.subr.bf16.mxu0 0
    %522 = vmatpush1.bf16.msra.mxu0 %v519
    %523 = vmatprep.subr.bf16.mxu0 0
    %524 = vmatpush1.bf16.msra.mxu0 0
    %525 = vmatprep.subr.bf16.mxu0 0
    %526 = vmatpush1.bf16.msra.mxu0 0
    %527 = vmatprep.subr.bf16.mxu0 0
    %528 = vmatpush1.bf16.msra.mxu0 0
    %529 = vmatprep.subr.bf16.mxu0 0
    %530 = vmatpush1.bf16.msra.mxu0 0
    %531 = vmatprep.subr.bf16.mxu0 0
    %532 = vmatpush1.bf16.msra.mxu0 0
    %533 = vmatprep.subr.bf16.mxu0 0
    %534 = vmatpush1.bf16.msra.mxu0 0
    %535 = vmatprep.subr.bf16.mxu0 0
    %536 = vmatpush1.bf16.msra.mxu0 0
    %537 = vmatprep.subr.bf16.mxu0 0
    %538 = vmatpush1.bf16.msra.mxu0 0
    %539 = vmatprep.subr.bf16.mxu0 0
    %540 = vmatpush1.bf16.msra.mxu0 0
    %541 = vmatprep.subr.bf16.mxu0 0
    %542 = vmatpush1.bf16.msra.mxu0 0
    %543 = vmatprep.subr.bf16.mxu0 0
    %544 = vmatpush1.bf16.msra.mxu0 0
    %545 = vmatprep.subr.bf16.mxu0 0
    %546 = vmatpush1.bf16.msra.mxu0 0
    %547 = vmatprep.subr.bf16.mxu0 0
    %548 = vmatpush1.bf16.msra.mxu0 0
    %549 = vmatprep.subr.bf16.mxu0 0
    %550 = vmatpush1.bf16.msra.mxu0 0
    %551 = vmatprep.subr.bf16.mxu0 0
    %552 = vmatpush1.bf16.msra.mxu0 0
    %553 = vmatprep.mubr.bf16.mxu0 0
    %554 = vmatmul.mubr.bf16.gmra.mrb[0].mxu0 %v516
    %v555 = vpop.f32.mrb[0].mxu0
    %v556 = vadd.f32 0.0, %v555
    %v557 = vpop.f32.mrb[0].mxu0
    %v558 = vpop.f32.mrb[0].mxu0
    %v559 = vpop.f32.mrb[0].mxu0
    %560 = vdwg.mxu0
    %561 = vst [vmem:[#allocation11] sm:$0xff] %v510
    %562 = vst [vmem:[#allocation11 + $0x8] sm:$0xff] %v556
    // Predicated region
    $region50: #{tpu_custom_call.1} parent=1 // pred_check
      _
    $region51: #{tpu_custom_call.1} parent=1 // pred_check_branch
      %564 = sbr.rel (0) target = $region53
    $region52: #{tpu_custom_call.1} parent=1 // pred_region
      %s566 = ssub.s32 256, 256
      %567 = vsyncadd [#allocation4], %s566
      %s568 = sshll.u32 [#allocation11], 4
      %s569 = int_to_ptr.vmem [resolvable:$true] %s568
      %574 = dma.vmem_to_hbm [thread:$0]  %s569, 256, %s7, [#allocation4], 128, 128, 8
    $region53: #{tpu_custom_call.1} parent=1 // pred_fallthru
      _
    // Predicated region
    $region54: #{tpu_custom_call.1} parent=1 // pred_check
      _
    $region55: #{tpu_custom_call.1} parent=1 // pred_check_branch
      %576 = sbr.rel (0) target = $region57
    $region56: #{tpu_custom_call.1} parent=1 // pred_region
      %s578 = ssub.s32 256, 256
      %579 = vsyncadd [#allocation13], %s578
      %s580 = sshll.u32 [#allocation12], 4
      %s581 = int_to_ptr.vmem [resolvable:$true] %s580
      %586 = dma.vmem_to_hbm [thread:$0]  %s581, 256, %s8, [#allocation13], 128, 128, 8
    $region57: #{tpu_custom_call.1} parent=1 // pred_fallthru
      _
    // Predicated region
    $region58: #{tpu_custom_call.1} parent=1 // pred_check
      _
    $region59: #{tpu_custom_call.1} parent=1 // pred_check_branch
      %588 = sbr.rel (0) target = $region61
    $region60: #{tpu_custom_call.1} parent=1 // pred_region
      %589 = dma.done [#allocation4], 256
    $region61: #{tpu_custom_call.1} parent=1 // pred_fallthru
      _
    // Predicated region
    $region62: #{tpu_custom_call.1} parent=1 // pred_check
      _
    $region63: #{tpu_custom_call.1} parent=1 // pred_check_branch
      %591 = sbr.rel (0) target = $region65
    $region64: #{tpu_custom_call.1} parent=1 // pred_region
      %592 = dma.done [#allocation13], 256
    $region65: #{tpu_custom_call.1} parent=1 // pred_fallthru
      _
    %593 = vsyncpa [#allocation3], 1
    %594 = vsyncpa [#allocation6], 1
    %595 = vsyncpa [#allocation9], 1
    %596 = vsyncpa [#allocation4], 1
    %597 = vsyncpa [#allocation13], 1

</llo_original>
